<compile_context>
chip_gen: v6e
topology: v6e:2x2x1
jax: 0.10.0
libtpu: 0.0.40
codegen_flags: <defaults>
</compile_context>

<pallas_src>
import functools

import jax
import jax.numpy as jnp
from jax.experimental import pallas as pl
from jax.experimental.pallas import tpu as pltpu


# ---------------------------------------------------------------------------
# Kernel: fused twin-Q MLP, single VMEM block, 3 MXU passes total.
# ---------------------------------------------------------------------------
def qnetwork_fused_kernel(x_ref, w_ref, b_ref, out_ref, *, ip, hp):
    # x0 in f32, cast once to bf16 for the MXU.
    x = x_ref[...].astype(jnp.bfloat16)                     # (B, IP)

    # Static, tile-aligned slices of the single bf16 weight slab (free).
    w1 = w_ref[0:ip, :]                                     # (IP, HP)
    w2 = w_ref[ip:ip + hp, :]                               # (HP, HP)
    w4 = w_ref[ip + hp:ip + 2 * hp, :]                      # (HP, HP)

    b1 = b_ref[0:1, :]                                      # (1, HP) f32
    b2 = b_ref[1:2, :]
    b4 = b_ref[2:3, :]

    # Layer 1 (both heads fused along the lane axis).
    h = jnp.dot(x, w1, preferred_element_type=jnp.float32) + b1
    h = jnp.maximum(h, 0.0)

    # Layer 2: block-diagonal keeps the two heads independent.
    h = jnp.dot(h.astype(jnp.bfloat16), w2,
                preferred_element_type=jnp.float32) + b2
    h = jnp.maximum(h, 0.0)

    # Layer 3: block-column weights -> col 0 = q1, col 1 = q2, cols >=2 zero.
    q = jnp.dot(h.astype(jnp.bfloat16), w4,
                preferred_element_type=jnp.float32) + b4
    out_ref[...] = q.astype(out_ref.dtype)                  # lane-dense (B, HP)


# ---------------------------------------------------------------------------
# Parameter construction (PyTorch nn.Linear default init) + one-time packing.
# ---------------------------------------------------------------------------
def init_linear(key, in_features, out_features, dtype=jnp.float32):
    """nn.Linear default init: U(-1/sqrt(fan_in), 1/sqrt(fan_in)).
    Weight stored (in, out), bias (1, out)."""
    kw, kb = jax.random.split(key)
    bound = 1.0 / jnp.sqrt(jnp.asarray(in_features, dtype))
    w = jax.random.uniform(kw, (in_features, out_features), dtype, -bound, bound)
    b = jax.random.uniform(kb, (1, out_features), dtype, -bound, bound)
    return w, b


def make_qnetwork_params(key, state_dim, action_dim, hidden_dim):
    keys = jax.random.split(key, 6)
    in_dim = state_dim + action_dim
    w1_1, b1_1 = init_linear(keys[0], in_dim, hidden_dim)
    w2_1, b2_1 = init_linear(keys[1], hidden_dim, hidden_dim)
    w4_1, b4_1 = init_linear(keys[2], hidden_dim, 1)
    w1_2, b1_2 = init_linear(keys[3], in_dim, hidden_dim)
    w2_2, b2_2 = init_linear(keys[4], hidden_dim, hidden_dim)
    w4_2, b4_2 = init_linear(keys[5], hidden_dim, 1)
    return (w1_1, b1_1, w2_1, b2_1, w4_1, b4_1,
            w1_2, b1_2, w2_2, b2_2, w4_2, b4_2)


def _round_up(x, m):
    return ((x + m - 1) // m) * m


def pack_qnetwork_params(params, state_dim, action_dim):
    """One-time packing of the 12 per-head tensors into:
         w_slab: bf16 (IP + 2*HP, HP)  -- W1 / W2 / W4 stacked, lane-padded
         b_slab: f32  (8, HP)          -- rows 0/1/2 = b1 / b2 / b4 (padded)
    """
    (w1_1, b1_1, w2_1, b2_1, w4_1, b4_1,
     w1_2, b1_2, w2_2, b2_2, w4_2, b4_2) = params
    H = w1_1.shape[1]
    in_dim = state_dim + action_dim
    ip = _round_up(in_dim, 16)              # bf16-tile-aligned K rows
    hp = max(128, _round_up(2 * H, 128))    # lane-padded fused hidden width

    f32 = jnp.float32
    # Layer-1 weights, fused over heads along lanes, zero-padded.
    w1 = jnp.zeros((ip, hp), f32)
    w1 = w1.at[:in_dim, 0:H].set(w1_1)
    w1 = w1.at[:in_dim, H:2 * H].set(w1_2)

    # Layer-2: block-diagonal so the heads stay independent.
    w2 = jnp.zeros((hp, hp), f32)
    w2 = w2.at[0:H, 0:H].set(w2_1)
    w2 = w2.at[H:2 * H, H:2 * H].set(w2_2)

    # Layer-3: block columns -> output col 0 = q1, col 1 = q2.
    w4 = jnp.zeros((hp, hp), f32)
    w4 = w4.at[0:H, 0].set(w4_1[:, 0])
    w4 = w4.at[H:2 * H, 1].set(w4_2[:, 0])

    w_slab = jnp.concatenate((w1, w2, w4), axis=0).astype(jnp.bfloat16)

    b_slab = jnp.zeros((8, hp), f32)
    b_slab = b_slab.at[0, 0:H].set(b1_1[0]).at[0, H:2 * H].set(b1_2[0])
    b_slab = b_slab.at[1, 0:H].set(b2_1[0]).at[1, H:2 * H].set(b2_2[0])
    b_slab = b_slab.at[2, 0].set(b4_1[0, 0]).at[2, 1].set(b4_2[0, 0])

    return w_slab, b_slab


# ---------------------------------------------------------------------------
# Forward wrapper.
# ---------------------------------------------------------------------------
@jax.jit
def qnetwork_forward(s, a, w_slab, b_slab):
    B = s.shape[0]
    hp = w_slab.shape[1]
    ip = w_slab.shape[0] - 2 * hp

    # Single lane-padded x0 (the tiny concat is cheaper than a split matmul).
    x0 = jnp.concatenate((s, a), axis=1)
    pad = ip - x0.shape[1]
    if pad:
        x0 = jnp.pad(x0, ((0, 0), (0, pad)))

    vmem = pl.BlockSpec(memory_space=pltpu.MemorySpace.VMEM)
    flops = 2 * B * (ip * hp + hp * hp + hp * hp)
    bytes_accessed = (x0.size * 4 + w_slab.size * 2 + b_slab.size * 4
                      + B * hp * 4)

    q = pl.pallas_call(
        functools.partial(qnetwork_fused_kernel, ip=ip, hp=hp),
        out_shape=jax.ShapeDtypeStruct((B, hp), jnp.float32),
        in_specs=[vmem, vmem, vmem],
        out_specs=vmem,
        cost_estimate=pl.CostEstimate(flops=flops, transcendentals=0,
                                      bytes_accessed=bytes_accessed),
    )(x0, w_slab, b_slab)

    # Expose only the two valid columns as the module's (B, 1) outputs.
    return q[:, 0:1], q[:, 1:2]


def qnetwork_ref(s, a, params):
    """Pure-JAX f32 reference on the unpacked (per-head) parameters."""
    (w1_1, b1_1, w2_1, b2_1, w4_1, b4_1,
     w1_2, b1_2, w2_2, b2_2, w4_2, b4_2) = params
    x0 = jnp.concatenate((s, a), axis=1)
    h1 = jax.nn.relu(x0 @ w1_1 + b1_1)
    h1 = jax.nn.relu(h1 @ w2_1 + b2_1)
    q1 = h1 @ w4_1 + b4_1
    h2 = jax.nn.relu(x0 @ w1_2 + b1_2)
    h2 = jax.nn.relu(h2 @ w2_2 + b2_2)
    q2 = h2 @ w4_2 + b4_2
    return q1, q2


if __name__ == "__main__":
    key = jax.random.PRNGKey(0)
    k_params, k_s, k_a = jax.random.split(key, 3)

    batch = 8
    state_dim = 12
    action_dim = 4
    hidden_dim = 32

    params = make_qnetwork_params(k_params, state_dim, action_dim, hidden_dim)
    w_slab, b_slab = pack_qnetwork_params(params, state_dim, action_dim)

    s = jax.random.normal(k_s, (batch, state_dim), jnp.float32)
    a = jax.random.normal(k_a, (batch, action_dim), jnp.float32)

    q1, q2 = qnetwork_forward(s, a, w_slab, b_slab)
    jax.block_until_ready((q1, q2))

    q1_ref, q2_ref = qnetwork_ref(s, a, params)
    assert q1.shape == (batch, 1) and q2.shape == (batch, 1)
    # bf16 matmul operands -> loosened tolerances vs. the f32 reference.
    assert jnp.allclose(q1, q1_ref, atol=3e-2, rtol=3e-2)
    assert jnp.allclose(q2, q2_ref, atol=3e-2, rtol=3e-2)

    print("KERNEL_OK")
</pallas_src>

<mosaic_0001>
module attributes {stable_mosaic.version = 11 : i64} {
  func.func @qnetwork_fused_kernel(%arg0: memref<8x16xf32, #tpu.memory_space<vmem>>, %arg1: memref<272x128xbf16, #tpu.memory_space<vmem>>, %arg2: memref<8x128xf32, #tpu.memory_space<vmem>>, %arg3: memref<8x128xf32, #tpu.memory_space<vmem>>) attributes {dimension_semantics = [], scalar_prefetch = 0 : i64, scratch_operands = 0 : i64, tpu.core_type = #tpu.core_type<tc>} {
    %c0 = arith.constant 0 : index
    %c0_0 = arith.constant 0 : index
    %0 = vector.load %arg0[%c0, %c0_0] : memref<8x16xf32, #tpu.memory_space<vmem>>, vector<8x16xf32>
    %1 = arith.truncf %0 : vector<8x16xf32> to vector<8x16xbf16>
    %c0_1 = arith.constant 0 : index
    %c0_2 = arith.constant 0 : index
    %2 = vector.load %arg1[%c0_1, %c0_2] : memref<272x128xbf16, #tpu.memory_space<vmem>>, vector<16x128xbf16>
    %c16 = arith.constant 16 : index
    %c0_3 = arith.constant 0 : index
    %3 = vector.load %arg1[%c16, %c0_3] : memref<272x128xbf16, #tpu.memory_space<vmem>>, vector<128x128xbf16>
    %c144 = arith.constant 144 : index
    %c0_4 = arith.constant 0 : index
    %4 = vector.load %arg1[%c144, %c0_4] : memref<272x128xbf16, #tpu.memory_space<vmem>>, vector<128x128xbf16>
    %c0_5 = arith.constant 0 : index
    %c0_6 = arith.constant 0 : index
    %5 = vector.load %arg2[%c0_5, %c0_6] : memref<8x128xf32, #tpu.memory_space<vmem>>, vector<1x128xf32>
    %c1 = arith.constant 1 : index
    %c0_7 = arith.constant 0 : index
    %6 = vector.load %arg2[%c1, %c0_7] : memref<8x128xf32, #tpu.memory_space<vmem>>, vector<1x128xf32>
    %c2 = arith.constant 2 : index
    %c0_8 = arith.constant 0 : index
    %7 = vector.load %arg2[%c2, %c0_8] : memref<8x128xf32, #tpu.memory_space<vmem>>, vector<1x128xf32>
    %cst = arith.constant dense<0.000000e+00> : vector<8x128xf32>
    %8 = tpu.matmul %1, %2, %cst {dimension_numbers = #tpu.dot_dimension_numbers<[1], [0], [0], [1], [0, 0, 1, 1], [], []>} : vector<8x16xbf16>, vector<16x128xbf16>, vector<8x128xf32> -> vector<8x128xf32>
    %9 = vector.broadcast %5 : vector<1x128xf32> to vector<8x128xf32>
    %10 = arith.addf %8, %9 : vector<8x128xf32>
    %cst_9 = arith.constant 0.000000e+00 : f32
    %11 = vector.broadcast %cst_9 : f32 to vector<8x128xf32>
    %12 = arith.maximumf %10, %11 : vector<8x128xf32>
    %13 = arith.truncf %12 : vector<8x128xf32> to vector<8x128xbf16>
    %cst_10 = arith.constant dense<0.000000e+00> : vector<8x128xf32>
    %14 = tpu.matmul %13, %3, %cst_10 {dimension_numbers = #tpu.dot_dimension_numbers<[1], [0], [0], [1], [0, 0, 1, 1], [], []>} : vector<8x128xbf16>, vector<128x128xbf16>, vector<8x128xf32> -> vector<8x128xf32>
    %15 = vector.broadcast %6 : vector<1x128xf32> to vector<8x128xf32>
    %16 = arith.addf %14, %15 : vector<8x128xf32>
    %cst_11 = arith.constant 0.000000e+00 : f32
    %17 = vector.broadcast %cst_11 : f32 to vector<8x128xf32>
    %18 = arith.maximumf %16, %17 : vector<8x128xf32>
    %19 = arith.truncf %18 : vector<8x128xf32> to vector<8x128xbf16>
    %cst_12 = arith.constant dense<0.000000e+00> : vector<8x128xf32>
    %20 = tpu.matmul %19, %4, %cst_12 {dimension_numbers = #tpu.dot_dimension_numbers<[1], [0], [0], [1], [0, 0, 1, 1], [], []>} : vector<8x128xbf16>, vector<128x128xbf16>, vector<8x128xf32> -> vector<8x128xf32>
    %21 = vector.broadcast %7 : vector<1x128xf32> to vector<8x128xf32>
    %22 = arith.addf %20, %21 : vector<8x128xf32>
    %c0_13 = arith.constant 0 : index
    %c0_14 = arith.constant 0 : index
    %23 = vector.load %arg3[%c0_13, %c0_14] : memref<8x128xf32, #tpu.memory_space<vmem>>, vector<8x128xf32>
    tpu.vector_store %arg3[%c0_13, %c0_14], %22 {strides = array<i32>} : memref<8x128xf32, #tpu.memory_space<vmem>>, vector<8x128xf32>,
    return
  }
}

</mosaic_0001>

<llo_original>
// kernel: qnetwork_forward.1
$region0: #{qnetwork_forward.1}
  #allocation0 [shape = 'u32[]', space=smem, size = 0x4, offset = 0x4, fixed_abs, tag = 'smem constant byte address 0x4 - core index']
  #allocation1 [shape = 'u32[144,128]{1,0:T(1,128)}', space=vmem, size = 0x12000, scoped, tag = 'internal scratch']
  %s0 = inlined_call_operand.vmem [shape: f32[8,16], index: 0, kind: input, shape index: {}]
  %s1 = inlined_call_operand.hbm [shape: bf16[272,128], index: 1, kind: input, shape index: {}]
  %s2 = inlined_call_operand.vmem [shape: f32[8,128], index: 2, kind: input, shape index: {}]
  %s3 = inlined_call_operand.vmem [shape: f32[8,128], index: 3, kind: output, shape index: {}]
  %s4 = sld [smem:[#allocation0]]
  $region26: #{qnetwork_forward.1} parent=0
    _
  %s6 = ssub.s32 1, %s4
  %s7 = scalar_select 0, %s6, %s4
  $region1: #{qnetwork_forward.1} parent=0
    #allocation2 [shape = 'u8[69632]{0}', space=vmem, size = 0x11000, scoped, tag = 'input window, operand 1, single buffered']
    #allocation3 [shape = 's32[1]{0}', space=sflag, size = 0x4, scoped, tag = 'scoped memory for qnetwork_forward.1']
    %8 = vsyncpa [#allocation3], 0
    // Predicated region
    $region2: #{qnetwork_forward.1} parent=1 // pred_check
      _
    $region3: #{qnetwork_forward.1} parent=1 // pred_check_branch
      %10 = sbr.rel (0) target = $region5
    $region4: #{qnetwork_forward.1} parent=1 // pred_region
      _
    $region5: #{qnetwork_forward.1} parent=1 // pred_fallthru
      _
    // Predicated region
    $region6: #{qnetwork_forward.1} parent=1 // pred_check
      _
    $region7: #{qnetwork_forward.1} parent=1 // pred_check_branch
      %12 = sbr.rel (0) target = $region9
    $region8: #{qnetwork_forward.1} parent=1 // pred_region
      %s14 = ssub.s32 2176, 2176
      %15 = vsyncadd [#allocation3], %s14
      %s16 = sshll.u32 [#allocation2], 4
      %s17 = int_to_ptr.vmem [resolvable:$true] %s16
      %22 = dma.hbm_to_vmem [thread:$0]  %s1, 2176, %s17, [#allocation3], 64, 64, 4
    $region9: #{qnetwork_forward.1} parent=1 // pred_fallthru
      _
    // Predicated region
    $region10: #{qnetwork_forward.1} parent=1 // pred_check
      _
    $region11: #{qnetwork_forward.1} parent=1 // pred_check_branch
      %24 = sbr.rel (0) target = $region13
    $region12: #{qnetwork_forward.1} parent=1 // pred_region
      _
    $region13: #{qnetwork_forward.1} parent=1 // pred_fallthru
      _
    // Predicated region
    $region14: #{qnetwork_forward.1} parent=1 // pred_check
      _
    $region15: #{qnetwork_forward.1} parent=1 // pred_check_branch
      %26 = sbr.rel (0) target = $region17
    $region16: #{qnetwork_forward.1} parent=1 // pred_region
      %27 = dma.done [#allocation3], 2176
    $region17: #{qnetwork_forward.1} parent=1 // pred_fallthru
      _
    %v29 = vld [vmem:[%s0] sm:$0xff]
    %v30 = vpack.c.bf16 %v29, %v29
    %v31 = vld [vmem:[#allocation2] sm:$0xf]
    %v32 = vld [vmem:[#allocation2 + $0x4] sm:$0xf]
    %v33 = vld [vmem:[#allocation2 + $0x8] sm:$0xf]
    %v34 = vld [vmem:[#allocation2 + $0xc] sm:$0xf]
    %v35 = vld [vmem:[#allocation2 + $0x10] sm:$0xf]
    %v36 = vld [vmem:[#allocation2 + $0x14] sm:$0xf]
    %v37 = vld [vmem:[#allocation2 + $0x18] sm:$0xf]
    %v38 = vld [vmem:[#allocation2 + $0x1c] sm:$0xf]
    %v39 = vld [vmem:[#allocation2 + $0x20] sm:$0xf]
    %v40 = vld [vmem:[#allocation2 + $0x24] sm:$0xf]
    %v41 = vld [vmem:[#allocation2 + $0x28] sm:$0xf]
    %v42 = vld [vmem:[#allocation2 + $0x2c] sm:$0xf]
    %v43 = vld [vmem:[#allocation2 + $0x30] sm:$0xf]
    %v44 = vld [vmem:[#allocation2 + $0x34] sm:$0xf]
    %v45 = vld [vmem:[#allocation2 + $0x38] sm:$0xf]
    %v46 = vld [vmem:[#allocation2 + $0x3c] sm:$0xf]
    %v47 = vld [vmem:[#allocation2 + $0x40] sm:$0xf]
    %v48 = vld [vmem:[#allocation2 + $0x44] sm:$0xf]
    %v49 = vld [vmem:[#allocation2 + $0x48] sm:$0xf]
    %v50 = vld [vmem:[#allocation2 + $0x4c] sm:$0xf]
    %v51 = vld [vmem:[#allocation2 + $0x50] sm:$0xf]
    %v52 = vld [vmem:[#allocation2 + $0x54] sm:$0xf]
    %v53 = vld [vmem:[#allocation2 + $0x58] sm:$0xf]
    %v54 = vld [vmem:[#allocation2 + $0x5c] sm:$0xf]
    %v55 = vld [vmem:[#allocation2 + $0x60] sm:$0xf]
    %v56 = vld [vmem:[#allocation2 + $0x64] sm:$0xf]
    %v57 = vld [vmem:[#allocation2 + $0x68] sm:$0xf]
    %v58 = vld [vmem:[#allocation2 + $0x6c] sm:$0xf]
    %v59 = vld [vmem:[#allocation2 + $0x70] sm:$0xf]
    %v60 = vld [vmem:[#allocation2 + $0x74] sm:$0xf]
    %v61 = vld [vmem:[#allocation2 + $0x78] sm:$0xf]
    %v62 = vld [vmem:[#allocation2 + $0x7c] sm:$0xf]
    %v63 = vld [vmem:[#allocation2 + $0x80] sm:$0xf]
    %v64 = vld [vmem:[#allocation2 + $0x84] sm:$0xf]
    %v65 = vld [vmem:[%s2] sm:$0x1]
    %v66 = vld [vmem:[%s2 + $0x1] sm:$0x1]
    %v67 = vld [vmem:[%s2 + $0x2] sm:$0x1]
    %v68 = vlaneseq
    %v69 = vshrl.u32 %v68, 7
    %v70 = vsub.s32 0, %v69
    %v71 = vrot.slane %v65, %v70
    %v74 = vunpack.c.l.b16 %v31
    %v75 = vunpack.c.l.b16 %v32
    %v76 = vpack.c.b16 %v75, %v74
    %vm78 = vcmask 130048
    %v80 = vsel %vm78, %v30, 0
    %82 = vmatprep.subr.bf16.mxu0 0
    %83 = vmatpush1.bf16.msra.mxu0 0
    %84 = vmatprep.subr.bf16.mxu0 0
    %85 = vmatpush1.bf16.msra.mxu0 0
    %86 = vmatprep.subr.bf16.mxu0 0
    %87 = vmatpush1.bf16.msra.mxu0 0
    %88 = vmatprep.subr.bf16.mxu0 0
    %89 = vmatpush1.bf16.msra.mxu0 0
    %90 = vmatprep.subr.bf16.mxu0 0
    %91 = vmatpush1.bf16.msra.mxu0 0
    %92 = vmatprep.subr.bf16.mxu0 0
    %93 = vmatpush1.bf16.msra.mxu0 0
    %94 = vmatprep.subr.bf16.mxu0 0
    %95 = vmatpush1.bf16.msra.mxu0 0
    %96 = vmatprep.subr.bf16.mxu0 0
    %97 = vmatpush1.bf16.msra.mxu0 %v76
    %98 = vmatprep.subr.bf16.mxu0 0
    %99 = vmatpush2.bf16.msra.mxu0 0
    %100 = vmatprep.subr.bf16.mxu0 0
    %101 = vmatpush2.bf16.msra.mxu0 0
    %102 = vmatprep.subr.bf16.mxu0 0
    %103 = vmatpush2.bf16.msra.mxu0 0
    %104 = vmatprep.subr.bf16.mxu0 0
    %105 = vmatpush2.bf16.msra.mxu0 0
    %106 = vmatprep.subr.bf16.mxu0 0
    %107 = vmatpush2.bf16.msra.mxu0 0
    %108 = vmatprep.subr.bf16.mxu0 0
    %109 = vmatpush2.bf16.msra.mxu0 0
    %110 = vmatprep.subr.bf16.mxu0 0
    %111 = vmatpush2.bf16.msra.mxu0 0
    %112 = vmatprep.subr.bf16.mxu0 0
    %113 = vmatpush2.bf16.msra.mxu0 0
    %114 = vmatprep.mubr.bf16.mxu0 0
    %115 = vmatmul.mubr.bf16.gmra.mxu0 %v80
    %v116 = vpop.f32.mrf.mxu0
    %v117 = vadd.f32 %v71, %v116
    %v118 = vpop.f32.mrf.mxu0
    %v119 = vpop.f32.mrf.mxu0
    %v120 = vpop.f32.mrf.mxu0
    %121 = vdwg.mxu0
    %v122 = vmax.f32 %v117, 0.0
    %v123 = vpack.c.bf16 %v122, %v122
    %v124 = vlaneseq
    %v125 = vshrl.u32 %v124, 7
    %v126 = vsub.s32 0, %v125
    %v127 = vrot.slane %v66, %v126
    %v144 = vunpack.c.l.b16 %v33
    %v145 = vunpack.c.l.b16 %v34
    %v146 = vunpack.c.l.b16 %v35
    %v147 = vunpack.c.l.b16 %v36
    %v148 = vunpack.c.l.b16 %v37
    %v149 = vunpack.c.l.b16 %v38
    %v150 = vunpack.c.l.b16 %v39
    %v151 = vunpack.c.l.b16 %v40
    %v152 = vunpack.c.l.b16 %v41
    %v153 = vunpack.c.l.b16 %v42
    %v154 = vunpack.c.l.b16 %v43
    %v155 = vunpack.c.l.b16 %v44
    %v156 = vunpack.c.l.b16 %v45
    %v157 = vunpack.c.l.b16 %v46
    %v158 = vunpack.c.l.b16 %v47
    %v159 = vunpack.c.l.b16 %v48
    %v160 = vpack.c.b16 %v145, %v144
    %v161 = vpack.c.b16 %v147, %v146
    %v162 = vpack.c.b16 %v149, %v148
    %v163 = vpack.c.b16 %v151, %v150
    %v164 = vpack.c.b16 %v153, %v152
    %v165 = vpack.c.b16 %v155, %v154
    %v166 = vpack.c.b16 %v157, %v156
    %v167 = vpack.c.b16 %v159, %v158
    %176 = vmatprep.subr.bf16.mxu0 0
    %177 = vmatpush1.bf16.msra.mxu0 %v167
    %178 = vmatprep.subr.bf16.mxu0 0
    %179 = vmatpush1.bf16.msra.mxu0 %v166
    %180 = vmatprep.subr.bf16.mxu0 0
    %181 = vmatpush1.bf16.msra.mxu0 %v165
    %182 = vmatprep.subr.bf16.mxu0 0
    %183 = vmatpush1.bf16.msra.mxu0 %v164
    %184 = vmatprep.subr.bf16.mxu0 0
    %185 = vmatpush1.bf16.msra.mxu0 %v163
    %186 = vmatprep.subr.bf16.mxu0 0
    %187 = vmatpush1.bf16.msra.mxu0 %v162
    %188 = vmatprep.subr.bf16.mxu0 0
    %189 = vmatpush1.bf16.msra.mxu0 %v161
    %190 = vmatprep.subr.bf16.mxu0 0
    %191 = vmatpush1.bf16.msra.mxu0 %v160
    %192 = vmatprep.subr.bf16.mxu0 0
    %193 = vmatpush2.bf16.msra.mxu0 0
    %194 = vmatprep.subr.bf16.mxu0 0
    %195 = vmatpush2.bf16.msra.mxu0 0
    %196 = vmatprep.subr.bf16.mxu0 0
    %197 = vmatpush2.bf16.msra.mxu0 0
    %198 = vmatprep.subr.bf16.mxu0 0
    %199 = vmatpush2.bf16.msra.mxu0 0
    %200 = vmatprep.subr.bf16.mxu0 0
    %201 = vmatpush2.bf16.msra.mxu0 0
    %202 = vmatprep.subr.bf16.mxu0 0
    %203 = vmatpush2.bf16.msra.mxu0 0
    %204 = vmatprep.subr.bf16.mxu0 0
    %205 = vmatpush2.bf16.msra.mxu0 0
    %206 = vmatprep.subr.bf16.mxu0 0
    %207 = vmatpush2.bf16.msra.mxu0 0
    %208 = vmatprep.mubr.bf16.mxu0 0
    %209 = vmatmul.mubr.bf16.gmra.mxu0 %v123
    %v210 = vpop.f32.mrf.mxu0
    %v211 = vadd.f32 %v127, %v210
    %v212 = vpop.f32.mrf.mxu0
    %v213 = vpop.f32.mrf.mxu0
    %v214 = vpop.f32.mrf.mxu0
    %215 = vdwg.mxu0
    %v216 = vmax.f32 %v211, 0.0
    %v217 = vpack.c.bf16 %v216, %v216
    %v218 = vlaneseq
    %v219 = vshrl.u32 %v218, 7
    %v220 = vsub.s32 0, %v219
    %v221 = vrot.slane %v67, %v220
    %v238 = vunpack.c.l.b16 %v49
    %v239 = vunpack.c.l.b16 %v50
    %v240 = vunpack.c.l.b16 %v51
    %v241 = vunpack.c.l.b16 %v52
    %v242 = vunpack.c.l.b16 %v53
    %v243 = vunpack.c.l.b16 %v54
    %v244 = vunpack.c.l.b16 %v55
    %v245 = vunpack.c.l.b16 %v56
    %v246 = vunpack.c.l.b16 %v57
    %v247 = vunpack.c.l.b16 %v58
    %v248 = vunpack.c.l.b16 %v59
    %v249 = vunpack.c.l.b16 %v60
    %v250 = vunpack.c.l.b16 %v61
    %v251 = vunpack.c.l.b16 %v62
    %v252 = vunpack.c.l.b16 %v63
    %v253 = vunpack.c.l.b16 %v64
    %v254 = vpack.c.b16 %v239, %v238
    %v255 = vpack.c.b16 %v241, %v240
    %v256 = vpack.c.b16 %v243, %v242
    %v257 = vpack.c.b16 %v245, %v244
    %v258 = vpack.c.b16 %v247, %v246
    %v259 = vpack.c.b16 %v249, %v248
    %v260 = vpack.c.b16 %v251, %v250
    %v261 = vpack.c.b16 %v253, %v252
    %270 = vmatprep.subr.bf16.mxu0 0
    %271 = vmatpush1.bf16.msra.mxu0 %v261
    %272 = vmatprep.subr.bf16.mxu0 0
    %273 = vmatpush1.bf16.msra.mxu0 %v260
    %274 = vmatprep.subr.bf16.mxu0 0
    %275 = vmatpush1.bf16.msra.mxu0 %v259
    %276 = vmatprep.subr.bf16.mxu0 0
    %277 = vmatpush1.bf16.msra.mxu0 %v258
    %278 = vmatprep.subr.bf16.mxu0 0
    %279 = vmatpush1.bf16.msra.mxu0 %v257
    %280 = vmatprep.subr.bf16.mxu0 0
    %281 = vmatpush1.bf16.msra.mxu0 %v256
    %282 = vmatprep.subr.bf16.mxu0 0
    %283 = vmatpush1.bf16.msra.mxu0 %v255
    %284 = vmatprep.subr.bf16.mxu0 0
    %285 = vmatpush1.bf16.msra.mxu0 %v254
    %286 = vmatprep.subr.bf16.mxu0 0
    %287 = vmatpush2.bf16.msra.mxu0 0
    %288 = vmatprep.subr.bf16.mxu0 0
    %289 = vmatpush2.bf16.msra.mxu0 0
    %290 = vmatprep.subr.bf16.mxu0 0
    %291 = vmatpush2.bf16.msra.mxu0 0
    %292 = vmatprep.subr.bf16.mxu0 0
    %293 = vmatpush2.bf16.msra.mxu0 0
    %294 = vmatprep.subr.bf16.mxu0 0
    %295 = vmatpush2.bf16.msra.mxu0 0
    %296 = vmatprep.subr.bf16.mxu0 0
    %297 = vmatpush2.bf16.msra.mxu0 0
    %298 = vmatprep.subr.bf16.mxu0 0
    %299 = vmatpush2.bf16.msra.mxu0 0
    %300 = vmatprep.subr.bf16.mxu0 0
    %301 = vmatpush2.bf16.msra.mxu0 0
    %302 = vmatprep.mubr.bf16.mxu0 0
    %303 = vmatmul.mubr.bf16.gmra.mxu0 %v217
    %v304 = vpop.f32.mrf.mxu0
    %v305 = vadd.f32 %v221, %v304
    %v306 = vpop.f32.mrf.mxu0
    %v307 = vpop.f32.mrf.mxu0
    %v308 = vpop.f32.mrf.mxu0
    %309 = vdwg.mxu0
    %310 = vst [vmem:[%s3] sm:$0xff] %v305
    // Predicated region
    $region18: #{qnetwork_forward.1} parent=1 // pred_check
      _
    $region19: #{qnetwork_forward.1} parent=1 // pred_check_branch
      %312 = sbr.rel (0) target = $region21
    $region20: #{qnetwork_forward.1} parent=1 // pred_region
      _
    $region21: #{qnetwork_forward.1} parent=1 // pred_fallthru
      _
    // Predicated region
    $region22: #{qnetwork_forward.1} parent=1 // pred_check
      _
    $region23: #{qnetwork_forward.1} parent=1 // pred_check_branch
      %314 = sbr.rel (0) target = $region25
    $region24: #{qnetwork_forward.1} parent=1 // pred_region
      _
    $region25: #{qnetwork_forward.1} parent=1 // pred_fallthru
      _
    %315 = vsyncpa [#allocation3], 1

</llo_original>
